<compile_context>
chip_gen: v5e
topology: v5e:2x2
jax: 0.10.0
libtpu: 0.0.40
codegen_flags: <defaults>
</compile_context>

<pallas_src>
import jax
import jax.numpy as jnp
from jax.experimental import pallas as pl
from jax.experimental.pallas import tpu as pltpu


def _transpose_tile_kernel(x_ref, o_ref):
    # x_ref: (tm, tt) tile of the (B*K, T) slab
    # o_ref: (tt, tm) tile of the (T, B*K) output
    # Plain 2-D transpose -> XLU vxpose path, lane-dense output stores.
    o_ref[...] = jnp.transpose(x_ref[...], (1, 0))


def _pick_tiles(M, T, itemsize, *, max_time_tile=512, tile_budget_bytes=2 << 20):
    """Pick (tm, tt) tiles satisfying TPU (8,128) layout rules.

    - A dim uses its full extent when small (always legal), otherwise a
      multiple of 128 (legal for both lane and sublane positions).
    - tm * tt * itemsize <= tile_budget_bytes, so the double-buffered
      footprint (2 arrays x 2 buffers x tile) stays ~4x that budget, well
      under every chip's scoped VMEM limit.
    """
    # Time tile: full T when small, else a 128-multiple capped at max_time_tile.
    if T <= max_time_tile:
        tt = T
    else:
        tt = max(128, (max_time_tile // 128) * 128)

    # Row tile: fill the remaining per-tile VMEM budget, 128-multiple, or full M.
    max_tm = max(128, (tile_budget_bytes // (tt * itemsize) // 128) * 128)
    if M <= max_tm:
        tm = M
    else:
        tm = max_tm
    return tm, tt


def flatten_input_to_rnn_input(x):
    """Pallas implementation of FlattenInput2RNNInput.forward.

    Args:
      x: (B, C, Q, F, T) array (any dtype).
    Returns:
      (T, B, C*Q*F) array with out[t, b, k] == x[b, c, q, f, t],
      k = (c*Q + q)*F + f (row-major flatten of (C, Q, F)).
    """
    B, C, Q, F, T = x.shape
    K = C * Q * F
    M = B * K
    itemsize = jnp.dtype(x.dtype).itemsize

    # Glue reshapes (pure row-major, no data movement).
    x2d = x.reshape(M, T)

    tm, tt = _pick_tiles(M, T, itemsize)
    grid = (pl.cdiv(M, tm), pl.cdiv(T, tt))  # partial edge tiles handled by Pallas

    # TODO(synk): for very small T (< 128) or a matmul consumer, fuse this
    # relayout into the consumer (dot_general over K, batched over T) instead
    # of paying a full extra HBM round trip.

    out2d = pl.pallas_call(
        _transpose_tile_kernel,
        out_shape=jax.ShapeDtypeStruct((T, M), x.dtype),
        grid_spec=pltpu.PrefetchScalarGridSpec(
            num_scalar_prefetch=0,
            grid=grid,
            in_specs=[pl.BlockSpec((tm, tt), lambda i, j: (i, j))],
            out_specs=pl.BlockSpec((tt, tm), lambda i, j: (j, i)),
        ),
        compiler_params=pltpu.CompilerParams(
            # Both tile axes are independent; megacore/core sharding is free
            # to split either one on multi-TC chips (v7x).
            dimension_semantics=("parallel", "parallel"),
            vmem_limit_bytes=32 * 1024 * 1024,
        ),
        cost_estimate=pl.CostEstimate(
            flops=0,
            transcendentals=0,
            bytes_accessed=2 * M * T * itemsize,
        ),
    )(x2d)

    return out2d.reshape(T, B, K)


def _reference(x):
    # Pure-JAX reference of the PyTorch forward.
    T = x.shape[-1]
    B = x.shape[0]
    return jnp.transpose(x, (4, 0, 1, 2, 3)).reshape(T, B, -1)


if __name__ == "__main__":
    key = jax.random.PRNGKey(0)

    # Small shapes consistent with the module: input_shape = (_, Q_in, F, _),
    # flattened feature size = 2 * Q_in * F  ->  C = 2 (the leading factor 2).
    B, C, Q, F, T = 2, 2, 4, 16, 8          # K = 2*4*16 = 128 (lane-friendly)
    x = jax.random.normal(key, (B, C, Q, F, T), dtype=jnp.float32)
    out = jax.block_until_ready(flatten_input_to_rnn_input(x))
    ref = _reference(x)
    assert out.shape == (T, B, C * Q * F), out.shape
    assert out.dtype == x.dtype
    assert jnp.allclose(out, ref), "mismatch vs reference permute+flatten"

    # Second check: feature size NOT a multiple of 128 (previously hit the
    # hard-coded tk assert); full-extent tiles keep it legal and correct.
    B2, C2, Q2, F2, T2 = 2, 2, 3, 25, 10    # K = 150, B*K = 300
    x2 = jax.random.normal(key, (B2, C2, Q2, F2, T2), dtype=jnp.float32)
    out2 = jax.block_until_ready(flatten_input_to_rnn_input(x2))
    ref2 = _reference(x2)
    assert out2.shape == (T2, B2, C2 * Q2 * F2), out2.shape
    assert jnp.allclose(out2, ref2), "mismatch vs reference (odd K)"

    print("KERNEL_OK")
</pallas_src>

<mosaic_0001>
module attributes {stable_mosaic.version = 11 : i64} {
  func.func @_transpose_tile_kernel(%arg0: i32, %arg1: i32, %arg2: memref<256x8xf32, #tpu.memory_space<vmem>>, %arg3: memref<8x256xf32, #tpu.memory_space<vmem>>) attributes {dimension_semantics = [#tpu.dimension_semantics<parallel>, #tpu.dimension_semantics<parallel>], iteration_bounds = array<i64: 1, 1>, scalar_prefetch = 0 : i64, scratch_operands = 0 : i64, tpu.core_type = #tpu.core_type<tc>, window_params = [{transform_indices = @transform_0, window_bounds = array<i64: 256, 8>}, {transform_indices = @transform_1, window_bounds = array<i64: 8, 256>}]} {
    %c0 = arith.constant 0 : index
    %c0_0 = arith.constant 0 : index
    %0 = vector.load %arg2[%c0, %c0_0] : memref<256x8xf32, #tpu.memory_space<vmem>>, vector<256x8xf32>
    %1 = tpu.transpose %0, [1, 0] : vector<256x8xf32> -> vector<8x256xf32>
    %c0_1 = arith.constant 0 : index
    %c0_2 = arith.constant 0 : index
    %2 = vector.load %arg3[%c0_1, %c0_2] : memref<8x256xf32, #tpu.memory_space<vmem>>, vector<8x256xf32>
    tpu.vector_store %arg3[%c0_1, %c0_2], %1 {strides = array<i32>} : memref<8x256xf32, #tpu.memory_space<vmem>>, vector<8x256xf32>,
    return
  }
  func.func @transform_0(%arg0: i32, %arg1: i32) -> (i32, i32) {
    %c0_i32 = arith.constant 0 : i32
    return %arg0, %arg1 : i32, i32
  }
  func.func @transform_1(%arg0: i32, %arg1: i32) -> (i32, i32) {
    %c0_i32 = arith.constant 0 : i32
    return %arg1, %arg0 : i32, i32
  }
}

</mosaic_0001>

<llo_original>
// kernel: tpu_custom_call.1
$region0: #{tpu_custom_call.1}
  #allocation0 [shape = 'u32[]', space=smem, size = 0x4, offset = 0x4, fixed_abs, tag = 'smem constant byte address 0x4 - core index']
  #allocation1 [shape = 'u32[72,128]{1,0:T(1,128)}', space=vmem, size = 0x9000, scoped, tag = 'internal scratch']
  %s0 = inlined_call_operand.vmem [shape: f32[256,8], index: 0, kind: input, shape index: {}]
  %s1 = inlined_call_operand.hbm [shape: f32[8,256], index: 1, kind: output, shape index: {}]
  %s2 = sld [smem:[#allocation0]]
  $region14: #{tpu_custom_call.1} parent=0
    _
  %s4 = ssub.s32 1, %s2
  %s5 = scalar_select 0, %s4, %s2
  $region1: #{tpu_custom_call.1} parent=0
    #allocation2 [shape = 'u8[8192]{0}', space=vmem, size = 0x2000, scoped, tag = 'output window, operand 0, single buffered']
    #allocation3 [shape = 's32[1]{0}', space=sflag, size = 0x4, scoped, tag = 'scoped memory for tpu_custom_call.1']
    %6 = vsyncpa [#allocation3], 0
    // Predicated region
    $region2: #{tpu_custom_call.1} parent=1 // pred_check
      _
    $region3: #{tpu_custom_call.1} parent=1 // pred_check_branch
      %8 = sbr.rel (0) target = $region5
    $region4: #{tpu_custom_call.1} parent=1 // pred_region
      _
    $region5: #{tpu_custom_call.1} parent=1 // pred_fallthru
      _
    %v9 = vld [vmem:[%s0] sm:$0xff]
    %v10 = vld [vmem:[%s0 + $0x8] sm:$0xff]
    %v11 = vld [vmem:[%s0 + $0x10] sm:$0xff]
    %v12 = vld [vmem:[%s0 + $0x18] sm:$0xff]
    %v13 = vld [vmem:[%s0 + $0x20] sm:$0xff]
    %v14 = vld [vmem:[%s0 + $0x28] sm:$0xff]
    %v15 = vld [vmem:[%s0 + $0x30] sm:$0xff]
    %v16 = vld [vmem:[%s0 + $0x38] sm:$0xff]
    %v17 = vld [vmem:[%s0 + $0x40] sm:$0xff]
    %v18 = vld [vmem:[%s0 + $0x48] sm:$0xff]
    %v19 = vld [vmem:[%s0 + $0x50] sm:$0xff]
    %v20 = vld [vmem:[%s0 + $0x58] sm:$0xff]
    %v21 = vld [vmem:[%s0 + $0x60] sm:$0xff]
    %v22 = vld [vmem:[%s0 + $0x68] sm:$0xff]
    %v23 = vld [vmem:[%s0 + $0x70] sm:$0xff]
    %v24 = vld [vmem:[%s0 + $0x78] sm:$0xff]
    %v25 = vld [vmem:[%s0 + $0x80] sm:$0xff]
    %v26 = vld [vmem:[%s0 + $0x88] sm:$0xff]
    %v27 = vld [vmem:[%s0 + $0x90] sm:$0xff]
    %v28 = vld [vmem:[%s0 + $0x98] sm:$0xff]
    %v29 = vld [vmem:[%s0 + $0xa0] sm:$0xff]
    %v30 = vld [vmem:[%s0 + $0xa8] sm:$0xff]
    %v31 = vld [vmem:[%s0 + $0xb0] sm:$0xff]
    %v32 = vld [vmem:[%s0 + $0xb8] sm:$0xff]
    %v33 = vld [vmem:[%s0 + $0xc0] sm:$0xff]
    %v34 = vld [vmem:[%s0 + $0xc8] sm:$0xff]
    %v35 = vld [vmem:[%s0 + $0xd0] sm:$0xff]
    %v36 = vld [vmem:[%s0 + $0xd8] sm:$0xff]
    %v37 = vld [vmem:[%s0 + $0xe0] sm:$0xff]
    %v38 = vld [vmem:[%s0 + $0xe8] sm:$0xff]
    %v39 = vld [vmem:[%s0 + $0xf0] sm:$0xff]
    %v40 = vld [vmem:[%s0 + $0xf8] sm:$0xff]
    %41 = vxpose.xlu0.b32.start [1/16] %v9, 128
    %42 = vxpose.xlu0.b32.cont [2/16] %v10, 128
    %43 = vxpose.xlu0.b32.cont [3/16] %v11, 128
    %44 = vxpose.xlu0.b32.cont [4/16] %v12, 128
    %45 = vxpose.xlu0.b32.cont [5/16] %v13, 128
    %46 = vxpose.xlu0.b32.cont [6/16] %v14, 128
    %47 = vxpose.xlu0.b32.cont [7/16] %v15, 128
    %48 = vxpose.xlu0.b32.cont [8/16] %v16, 128
    %49 = vxpose.xlu0.b32.cont [9/16] %v17, 128
    %50 = vxpose.xlu0.b32.cont [10/16] %v18, 128
    %51 = vxpose.xlu0.b32.cont [11/16] %v19, 128
    %52 = vxpose.xlu0.b32.cont [12/16] %v20, 128
    %53 = vxpose.xlu0.b32.cont [13/16] %v21, 128
    %54 = vxpose.xlu0.b32.cont [14/16] %v22, 128
    %55 = vxpose.xlu0.b32.cont [15/16] %v23, 128
    %56 = vxpose.xlu0.b32.end [16/16] %v24, 128
    %v57 = vpop.trf.xlu0
    %v58 = vpop.trf.xlu0
    %v59 = vpop.trf.xlu0
    %v60 = vpop.trf.xlu0
    %v61 = vpop.trf.xlu0
    %v62 = vpop.trf.xlu0
    %v63 = vpop.trf.xlu0
    %v64 = vpop.trf.xlu0
    %v65 = vpop.trf.xlu0
    %v66 = vpop.trf.xlu0
    %v67 = vpop.trf.xlu0
    %v68 = vpop.trf.xlu0
    %v69 = vpop.trf.xlu0
    %v70 = vpop.trf.xlu0
    %v71 = vpop.trf.xlu0
    %v72 = vpop.trf.xlu0
    %73 = vxpose.xlu0.b32.start [1/16] %v25, 128
    %74 = vxpose.xlu0.b32.cont [2/16] %v26, 128
    %75 = vxpose.xlu0.b32.cont [3/16] %v27, 128
    %76 = vxpose.xlu0.b32.cont [4/16] %v28, 128
    %77 = vxpose.xlu0.b32.cont [5/16] %v29, 128
    %78 = vxpose.xlu0.b32.cont [6/16] %v30, 128
    %79 = vxpose.xlu0.b32.cont [7/16] %v31, 128
    %80 = vxpose.xlu0.b32.cont [8/16] %v32, 128
    %81 = vxpose.xlu0.b32.cont [9/16] %v33, 128
    %82 = vxpose.xlu0.b32.cont [10/16] %v34, 128
    %83 = vxpose.xlu0.b32.cont [11/16] %v35, 128
    %84 = vxpose.xlu0.b32.cont [12/16] %v36, 128
    %85 = vxpose.xlu0.b32.cont [13/16] %v37, 128
    %86 = vxpose.xlu0.b32.cont [14/16] %v38, 128
    %87 = vxpose.xlu0.b32.cont [15/16] %v39, 128
    %88 = vxpose.xlu0.b32.end [16/16] %v40, 128
    %v89 = vpop.trf.xlu0
    %v90 = vpop.trf.xlu0
    %v91 = vpop.trf.xlu0
    %v92 = vpop.trf.xlu0
    %v93 = vpop.trf.xlu0
    %v94 = vpop.trf.xlu0
    %v95 = vpop.trf.xlu0
    %v96 = vpop.trf.xlu0
    %v97 = vpop.trf.xlu0
    %v98 = vpop.trf.xlu0
    %v99 = vpop.trf.xlu0
    %v100 = vpop.trf.xlu0
    %v101 = vpop.trf.xlu0
    %v102 = vpop.trf.xlu0
    %v103 = vpop.trf.xlu0
    %v104 = vpop.trf.xlu0
    %105 = vst [vmem:[#allocation2] sm:$0xff] %v57
    %106 = vst [vmem:[#allocation2 + $0x8] sm:$0xff] %v89
    // Predicated region
    $region6: #{tpu_custom_call.1} parent=1 // pred_check
      _
    $region7: #{tpu_custom_call.1} parent=1 // pred_check_branch
      %108 = sbr.rel (0) target = $region9
    $region8: #{tpu_custom_call.1} parent=1 // pred_region
      %110 = vsyncadd [#allocation3], 0
      %s112 = sshll.u32 [#allocation2], 4
      %s113 = int_to_ptr.vmem [resolvable:$true] %s112
      %s114 = sshll.u32 %s1, 4
      %s115 = int_to_ptr.hbm [resolvable:$true] %s114
      %117 = dma.vmem_to_hbm [thread:$0]  %s113, 256, %s115, [#allocation3]
    $region9: #{tpu_custom_call.1} parent=1 // pred_fallthru
      _
    // Predicated region
    $region10: #{tpu_custom_call.1} parent=1 // pred_check
      _
    $region11: #{tpu_custom_call.1} parent=1 // pred_check_branch
      %119 = sbr.rel (0) target = $region13
    $region12: #{tpu_custom_call.1} parent=1 // pred_region
      %121 = dma.done [#allocation3], 256
    $region13: #{tpu_custom_call.1} parent=1 // pred_fallthru
      _
    %122 = vsyncpa [#allocation3], 1

</llo_original>
